<compile_context>
chip_gen: v7x
topology: tpu7x:2x2x1
jax: 0.10.0
libtpu: 0.0.40
codegen_flags: <defaults>
</compile_context>

<pallas_src>
import math

import jax
import jax.numpy as jnp
from jax.experimental import pallas as pl
from jax.experimental.pallas import tpu as pltpu

IN_DIM = 8
HIDDEN = 256
OUT_DIM = 1
LOG_SQRT_2PI = 0.5 * math.log(2.0 * math.pi)

LANE = 128        # lane width: batch now maps to lanes
TM_MAX = 4096     # max batch-tile (lanes); h temp = 256*4*TM bytes = 4 MiB @ 4096


def _policy_kernel(xt_ref, w1t_ref, b1_ref, wht_ref, bh_ref, eps_ref, out_ref):
    xt = xt_ref[...]                                            # (8, TM)

    # fc1 + ReLU (MXU): (256, 8) @ (8, TM) -> (256, TM), batch on lanes
    h = jnp.dot(w1t_ref[...], xt, preferred_element_type=jnp.float32)
    h = jnp.maximum(h + b1_ref[...], 0.0)                       # (256, TM)

    # fused heads: rows [mu, std_pre] in one MXU pass: (2, 256) @ (256, TM)
    heads = jnp.dot(wht_ref[...], h, preferred_element_type=jnp.float32) + bh_ref[...]
    mu = heads[0:1, :]                                          # (1, TM) lane-dense
    std_pre = heads[1:2, :]                                     # (1, TM) lane-dense

    # branch-free numerically-stable softplus (matches F.softplus in f32)
    std = jnp.maximum(std_pre, 0.0) + jnp.log1p(jnp.exp(-jnp.abs(std_pre)))

    # Normal(mu, std).rsample() and its log_prob.
    # action = mu + std*eps  =>  (action - mu)/std == eps exactly, so the
    # quadratic term is just -0.5*eps^2 (no divide, no 0/0 hazard).
    eps = eps_ref[...]                                          # (1, TM)
    action = mu + std * eps
    log_prob = -0.5 * eps * eps - jnp.log(std) - LOG_SQRT_2PI

    # tanh squash + log-det correction; direct row-slice stores (no concat)
    t = jnp.tanh(action)
    out_ref[0:1, :] = t
    out_ref[1:2, :] = log_prob - jnp.log(1.0 - t * t + 1e-07)


def _round_up(n, m):
    return ((n + m - 1) // m) * m


def _choose_tile(b):
    """Pick (tm, padded_b): lane-multiple tile, >=2 tiles when possible (v7x)."""
    padded = _round_up(b, LANE)
    n_tiles = pl.cdiv(padded, TM_MAX)
    if padded > LANE:
        n_tiles = max(n_tiles, 2)          # engage both TensorCores on v7x
    tm = _round_up(pl.cdiv(padded, n_tiles), LANE)
    padded = _round_up(padded, tm)
    return tm, padded


def policy_net_forward(x, params, eps):
    """x: (B, 8) f32, eps: (B, 1) f32 standard-normal noise.

    Returns (real_action, real_log_prob), both (B, 1) f32.
    """
    B = x.shape[0]
    w1, b1, wmu, bmu, wstd, bstd = params

    # Fuse the two heads into one (256, 2) weight / (1, 2) bias, then transpose
    # everything once (tiny, wrapper-side layout plumbing) for batch-on-lanes.
    w1t = w1.T                                                  # (256, 8)
    b1t = b1.T                                                  # (256, 1)
    wht = jnp.concatenate([wmu, wstd], axis=1).T                # (2, 256)
    bht = jnp.concatenate([bmu, bstd], axis=1).T                # (2, 1)

    tm, padded_b = _choose_tile(B)
    if padded_b != B:
        pad = padded_b - B
        x = jnp.pad(x, ((0, pad), (0, 0)))
        eps = jnp.pad(eps, ((0, pad), (0, 0)))
    xt = x.T                                                    # (8, padded_b)
    eps_t = eps.T                                               # (1, padded_b)

    grid = (padded_b // tm,)
    out = pl.pallas_call(
        _policy_kernel,
        out_shape=jax.ShapeDtypeStruct((2, padded_b), jnp.float32),
        grid_spec=pltpu.PrefetchScalarGridSpec(
            num_scalar_prefetch=0,
            grid=grid,
            in_specs=[
                pl.BlockSpec((IN_DIM, tm), lambda i: (0, i)),      # x^T (streamed)
                pl.BlockSpec((HIDDEN, IN_DIM), lambda i: (0, 0)),  # W1^T (resident)
                pl.BlockSpec((HIDDEN, 1), lambda i: (0, 0)),       # b1 (resident)
                pl.BlockSpec((2, HIDDEN), lambda i: (0, 0)),       # Wh^T (resident)
                pl.BlockSpec((2, 1), lambda i: (0, 0)),            # bh (resident)
                pl.BlockSpec((1, tm), lambda i: (0, i)),           # eps^T (streamed)
            ],
            out_specs=pl.BlockSpec((2, tm), lambda i: (0, i)),
        ),
        compiler_params=pltpu.CompilerParams(
            dimension_semantics=("parallel",)),                    # both TCs on v7x
    )(xt, w1t, b1t, wht, bht, eps_t)

    real_action = out[0:1, :B].T                                 # (B, 1)
    real_log_prob = out[1:2, :B].T                               # (B, 1)
    return real_action, real_log_prob


def init_params(key):
    """Deterministic init mimicking nn.Linear's U(-1/sqrt(fan_in), 1/sqrt(fan_in))."""
    k1, k2, k3, k4, k5, k6 = jax.random.split(key, 6)
    lim1 = 1.0 / math.sqrt(IN_DIM)
    lim2 = 1.0 / math.sqrt(HIDDEN)
    w1 = jax.random.uniform(k1, (IN_DIM, HIDDEN), jnp.float32, -lim1, lim1)
    b1 = jax.random.uniform(k2, (1, HIDDEN), jnp.float32, -lim1, lim1)
    wmu = jax.random.uniform(k3, (HIDDEN, OUT_DIM), jnp.float32, -lim2, lim2)
    bmu = jax.random.uniform(k4, (1, OUT_DIM), jnp.float32, -lim2, lim2)
    wstd = jax.random.uniform(k5, (HIDDEN, OUT_DIM), jnp.float32, -lim2, lim2)
    bstd = jax.random.uniform(k6, (1, OUT_DIM), jnp.float32, -lim2, lim2)
    return (w1, b1, wmu, bmu, wstd, bstd)


# TODO(synk): optimizer / log_alpha / train_net are training-side state with no
# forward-pass Pallas equivalent; only forward() is implemented here.

if __name__ == "__main__":
    key = jax.random.PRNGKey(0)
    k_params, k_x, k_eps = jax.random.split(key, 3)

    B = 2
    params = init_params(k_params)
    x = jax.random.normal(k_x, (B, IN_DIM), jnp.float32)
    eps = jax.random.normal(k_eps, (B, OUT_DIM), jnp.float32)

    real_action, real_log_prob = policy_net_forward(x, params, eps)
    jax.block_until_ready((real_action, real_log_prob))

    # sanity: shapes, finiteness, squash bound
    assert real_action.shape == (B, OUT_DIM)
    assert real_log_prob.shape == (B, OUT_DIM)
    assert bool(jnp.all(jnp.isfinite(real_action)))
    assert bool(jnp.all(jnp.isfinite(real_log_prob)))
    assert bool(jnp.all(jnp.abs(real_action) <= 1.0))

    # cross-check against a pure-JAX reference of the same forward pass
    w1, b1, wmu, bmu, wstd, bstd = params
    h = jnp.maximum(x @ w1 + b1, 0.0)
    mu_ref = h @ wmu + bmu
    std_ref = jax.nn.softplus(h @ wstd + bstd)
    act_ref = mu_ref + std_ref * eps
    lp_ref = -0.5 * eps * eps - jnp.log(std_ref) - LOG_SQRT_2PI
    t_ref = jnp.tanh(act_ref)
    rlp_ref = lp_ref - jnp.log(1.0 - t_ref * t_ref + 1e-07)
    assert bool(jnp.allclose(real_action, t_ref, atol=1e-5, rtol=1e-5))
    assert bool(jnp.allclose(real_log_prob, rlp_ref, atol=1e-5, rtol=1e-5))

    # also exercise a larger, non-multiple-of-128 batch through the tiled path
    B2 = 2100
    x2 = jax.random.normal(k_x, (B2, IN_DIM), jnp.float32)
    eps2 = jax.random.normal(k_eps, (B2, OUT_DIM), jnp.float32)
    a2, lp2 = policy_net_forward(x2, params, eps2)
    jax.block_until_ready((a2, lp2))
    assert a2.shape == (B2, OUT_DIM) and lp2.shape == (B2, OUT_DIM)
    assert bool(jnp.all(jnp.isfinite(a2))) and bool(jnp.all(jnp.isfinite(lp2)))

    print("KERNEL_OK")
</pallas_src>

<mosaic_0001>
module attributes {stable_mosaic.version = 11 : i64} {
  func.func @_policy_kernel(%arg0: i32, %arg1: memref<8x128xf32, #tpu.memory_space<vmem>>, %arg2: memref<256x8xf32, #tpu.memory_space<vmem>>, %arg3: memref<256x1xf32, #tpu.memory_space<vmem>>, %arg4: memref<2x256xf32, #tpu.memory_space<vmem>>, %arg5: memref<2x1xf32, #tpu.memory_space<vmem>>, %arg6: memref<1x128xf32, #tpu.memory_space<vmem>>, %arg7: memref<2x128xf32, #tpu.memory_space<vmem>>) attributes {dimension_semantics = [#tpu.dimension_semantics<parallel>], iteration_bounds = array<i64: 1>, scalar_prefetch = 0 : i64, scratch_operands = 0 : i64, tpu.core_type = #tpu.core_type<tc>, window_params = [{transform_indices = @transform_0, window_bounds = array<i64: 8, 128>}, {pipeline_mode = #tpu.pipeline_mode<synchronous>, transform_indices = @transform_1, window_bounds = array<i64: 256, 8>}, {pipeline_mode = #tpu.pipeline_mode<synchronous>, transform_indices = @transform_2, window_bounds = array<i64: 256, 1>}, {pipeline_mode = #tpu.pipeline_mode<synchronous>, transform_indices = @transform_3, window_bounds = array<i64: 2, 256>}, {pipeline_mode = #tpu.pipeline_mode<synchronous>, transform_indices = @transform_4, window_bounds = array<i64: 2, 1>}, {transform_indices = @transform_5, window_bounds = array<i64: 1, 128>}, {transform_indices = @transform_6, window_bounds = array<i64: 2, 128>}]} {
    %c0 = arith.constant 0 : index
    %c0_0 = arith.constant 0 : index
    %0 = vector.load %arg1[%c0, %c0_0] : memref<8x128xf32, #tpu.memory_space<vmem>>, vector<8x128xf32>
    %c0_1 = arith.constant 0 : index
    %c0_2 = arith.constant 0 : index
    %1 = vector.load %arg2[%c0_1, %c0_2] : memref<256x8xf32, #tpu.memory_space<vmem>>, vector<256x8xf32>
    %cst = arith.constant dense<0.000000e+00> : vector<256x128xf32>
    %2 = tpu.matmul %1, %0, %cst {dimension_numbers = #tpu.dot_dimension_numbers<[1], [0], [0], [1], [0, 0, 1, 1], [], []>} : vector<256x8xf32>, vector<8x128xf32>, vector<256x128xf32> -> vector<256x128xf32>
    %c0_3 = arith.constant 0 : index
    %c0_4 = arith.constant 0 : index
    %3 = vector.load %arg3[%c0_3, %c0_4] : memref<256x1xf32, #tpu.memory_space<vmem>>, vector<256x1xf32>
    %4 = vector.broadcast %3 : vector<256x1xf32> to vector<256x128xf32>
    %5 = arith.addf %2, %4 : vector<256x128xf32>
    %cst_5 = arith.constant 0.000000e+00 : f32
    %6 = vector.broadcast %cst_5 : f32 to vector<256x128xf32>
    %7 = arith.maximumf %5, %6 : vector<256x128xf32>
    %c0_6 = arith.constant 0 : index
    %c0_7 = arith.constant 0 : index
    %8 = vector.load %arg4[%c0_6, %c0_7] : memref<2x256xf32, #tpu.memory_space<vmem>>, vector<2x256xf32>
    %cst_8 = arith.constant dense<0.000000e+00> : vector<2x128xf32>
    %9 = tpu.matmul %8, %7, %cst_8 {dimension_numbers = #tpu.dot_dimension_numbers<[1], [0], [0], [1], [0, 0, 1, 1], [], []>} : vector<2x256xf32>, vector<256x128xf32>, vector<2x128xf32> -> vector<2x128xf32>
    %c0_9 = arith.constant 0 : index
    %c0_10 = arith.constant 0 : index
    %10 = vector.load %arg5[%c0_9, %c0_10] : memref<2x1xf32, #tpu.memory_space<vmem>>, vector<2x1xf32>
    %11 = vector.broadcast %10 : vector<2x1xf32> to vector<2x128xf32>
    %12 = arith.addf %9, %11 : vector<2x128xf32>
    %13 = vector.extract_strided_slice %12 {offsets = [0, 0], sizes = [1, 128], strides = [1, 1]} : vector<2x128xf32> to vector<1x128xf32>
    %14 = vector.extract_strided_slice %12 {offsets = [1, 0], sizes = [1, 128], strides = [1, 1]} : vector<2x128xf32> to vector<1x128xf32>
    %cst_11 = arith.constant 0.000000e+00 : f32
    %15 = vector.broadcast %cst_11 : f32 to vector<1x128xf32>
    %16 = arith.maximumf %14, %15 : vector<1x128xf32>
    %17 = math.absf %14 : vector<1x128xf32>
    %cst_12 = arith.constant 0.000000e+00 : f32
    %18 = vector.broadcast %cst_12 : f32 to vector<1x128xf32>
    %19 = arith.subf %18, %17 : vector<1x128xf32>
    %20 = math.exp %19 : vector<1x128xf32>
    %21 = math.log1p %20 : vector<1x128xf32>
    %22 = arith.addf %16, %21 : vector<1x128xf32>
    %c0_13 = arith.constant 0 : index
    %c0_14 = arith.constant 0 : index
    %23 = vector.load %arg6[%c0_13, %c0_14] : memref<1x128xf32, #tpu.memory_space<vmem>>, vector<1x128xf32>
    %24 = arith.mulf %22, %23 : vector<1x128xf32>
    %25 = arith.addf %13, %24 : vector<1x128xf32>
    %cst_15 = arith.constant -5.000000e-01 : f32
    %26 = vector.broadcast %cst_15 : f32 to vector<1x128xf32>
    %27 = arith.mulf %26, %23 : vector<1x128xf32>
    %28 = arith.mulf %27, %23 : vector<1x128xf32>
    %29 = math.log %22 : vector<1x128xf32>
    %30 = arith.subf %28, %29 : vector<1x128xf32>
    %cst_16 = arith.constant 0.918938517 : f32
    %31 = vector.broadcast %cst_16 : f32 to vector<1x128xf32>
    %32 = arith.subf %30, %31 : vector<1x128xf32>
    %33 = math.tanh %25 : vector<1x128xf32>
    %c0_17 = arith.constant 0 : index
    %c0_18 = arith.constant 0 : index
    %34 = vector.load %arg7[%c0_17, %c0_18] : memref<2x128xf32, #tpu.memory_space<vmem>>, vector<1x128xf32>
    tpu.vector_store %arg7[%c0_17, %c0_18], %33 {strides = array<i32>} : memref<2x128xf32, #tpu.memory_space<vmem>>, vector<1x128xf32>,
    %35 = arith.mulf %33, %33 : vector<1x128xf32>
    %cst_19 = arith.constant 1.000000e+00 : f32
    %36 = vector.broadcast %cst_19 : f32 to vector<1x128xf32>
    %37 = arith.subf %36, %35 : vector<1x128xf32>
    %cst_20 = arith.constant 1.000000e-07 : f32
    %38 = vector.broadcast %cst_20 : f32 to vector<1x128xf32>
    %39 = arith.addf %37, %38 : vector<1x128xf32>
    %40 = math.log %39 : vector<1x128xf32>
    %41 = arith.subf %32, %40 : vector<1x128xf32>
    %c1 = arith.constant 1 : index
    %c0_21 = arith.constant 0 : index
    %42 = vector.load %arg7[%c1, %c0_21] : memref<2x128xf32, #tpu.memory_space<vmem>>, vector<1x128xf32>
    tpu.vector_store %arg7[%c1, %c0_21], %41 {strides = array<i32>} : memref<2x128xf32, #tpu.memory_space<vmem>>, vector<1x128xf32>,
    return
  }
  func.func @transform_0(%arg0: i32) -> (i32, i32) {
    %c0_i32 = arith.constant 0 : i32
    %c0_i32_0 = arith.constant 0 : i32
    return %c0_i32, %arg0 : i32, i32
  }
  func.func @transform_1(%arg0: i32) -> (i32, i32) {
    %c0_i32 = arith.constant 0 : i32
    %c0_i32_0 = arith.constant 0 : i32
    %c0_i32_1 = arith.constant 0 : i32
    return %c0_i32, %c0_i32_0 : i32, i32
  }
  func.func @transform_2(%arg0: i32) -> (i32, i32) {
    %c0_i32 = arith.constant 0 : i32
    %c0_i32_0 = arith.constant 0 : i32
    %c0_i32_1 = arith.constant 0 : i32
    return %c0_i32, %c0_i32_0 : i32, i32
  }
  func.func @transform_3(%arg0: i32) -> (i32, i32) {
    %c0_i32 = arith.constant 0 : i32
    %c0_i32_0 = arith.constant 0 : i32
    %c0_i32_1 = arith.constant 0 : i32
    return %c0_i32, %c0_i32_0 : i32, i32
  }
  func.func @transform_4(%arg0: i32) -> (i32, i32) {
    %c0_i32 = arith.constant 0 : i32
    %c0_i32_0 = arith.constant 0 : i32
    %c0_i32_1 = arith.constant 0 : i32
    return %c0_i32, %c0_i32_0 : i32, i32
  }
  func.func @transform_5(%arg0: i32) -> (i32, i32) {
    %c0_i32 = arith.constant 0 : i32
    %c0_i32_0 = arith.constant 0 : i32
    return %c0_i32, %arg0 : i32, i32
  }
  func.func @transform_6(%arg0: i32) -> (i32, i32) {
    %c0_i32 = arith.constant 0 : i32
    %c0_i32_0 = arith.constant 0 : i32
    return %c0_i32, %arg0 : i32, i32
  }
}

</mosaic_0001>

<llo_original>
// kernel: tpu_custom_call.1
$region0: #{tpu_custom_call.1}
  #allocation0 [shape = 'u32[]', space=smem, size = 0x4, offset = 0x4, fixed_abs, tag = 'smem constant byte address 0x4 - core index']
  #allocation1 [shape = 'u32[144,128]{1,0:T(1,128)}', space=vmem, size = 0x12000, scoped, tag = 'internal scratch']
  %s0 = inlined_call_operand.vmem [shape: f32[8,128], index: 0, kind: input, shape index: {}]
  %s1 = inlined_call_operand.vmem [shape: f32[256,8], index: 1, kind: input, shape index: {}]
  %s2 = inlined_call_operand.vmem [shape: f32[256,1], index: 2, kind: input, shape index: {}]
  %s3 = inlined_call_operand.vmem [shape: f32[2,256], index: 3, kind: input, shape index: {}]
  %s4 = inlined_call_operand.vmem [shape: f32[2,1], index: 4, kind: input, shape index: {}]
  %s5 = inlined_call_operand.vmem [shape: f32[1,128], index: 5, kind: input, shape index: {}]
  %s6 = inlined_call_operand.hbm [shape: f32[2,128], index: 6, kind: output, shape index: {}]
  %s7 = sld [smem:[#allocation0]]
  $region34: #{tpu_custom_call.1} parent=0
    _
  %s9 = ssub.s32 1, %s7
  %s10 = scalar_select 0, %s9, %s7
  $region1: #{tpu_custom_call.1} parent=0
    #allocation2 [shape = 'u8[1024]{0}', space=vmem, size = 0x400, scoped, tag = 'output window, operand 0, single buffered']
    #allocation3 [shape = 's32[1]{0}', space=sflag, size = 0x4, scoped, tag = 'scoped memory for tpu_custom_call.1']
    %11 = vsyncpa [#allocation3], 0
    // Predicated region
    $region2: #{tpu_custom_call.1} parent=1 // pred_check
      _
    $region3: #{tpu_custom_call.1} parent=1 // pred_check_branch
      %13 = sbr.rel (0) target = $region5
    $region4: #{tpu_custom_call.1} parent=1 // pred_region
      _
    $region5: #{tpu_custom_call.1} parent=1 // pred_fallthru
      _
    // Predicated region
    $region6: #{tpu_custom_call.1} parent=1 // pred_check
      _
    $region7: #{tpu_custom_call.1} parent=1 // pred_check_branch
      %15 = sbr.rel (0) target = $region9
    $region8: #{tpu_custom_call.1} parent=1 // pred_region
      _
    $region9: #{tpu_custom_call.1} parent=1 // pred_fallthru
      _
    // Predicated region
    $region10: #{tpu_custom_call.1} parent=1 // pred_check
      _
    $region11: #{tpu_custom_call.1} parent=1 // pred_check_branch
      %17 = sbr.rel (0) target = $region13
    $region12: #{tpu_custom_call.1} parent=1 // pred_region
      _
    $region13: #{tpu_custom_call.1} parent=1 // pred_fallthru
      _
    // Predicated region
    $region14: #{tpu_custom_call.1} parent=1 // pred_check
      _
    $region15: #{tpu_custom_call.1} parent=1 // pred_check_branch
      %19 = sbr.rel (0) target = $region17
    $region16: #{tpu_custom_call.1} parent=1 // pred_region
      _
    $region17: #{tpu_custom_call.1} parent=1 // pred_fallthru
      _
    // Predicated region
    $region18: #{tpu_custom_call.1} parent=1 // pred_check
      _
    $region19: #{tpu_custom_call.1} parent=1 // pred_check_branch
      %21 = sbr.rel (0) target = $region21
    $region20: #{tpu_custom_call.1} parent=1 // pred_region
      _
    $region21: #{tpu_custom_call.1} parent=1 // pred_fallthru
      _
    // Predicated region
    $region22: #{tpu_custom_call.1} parent=1 // pred_check
      _
    $region23: #{tpu_custom_call.1} parent=1 // pred_check_branch
      %23 = sbr.rel (0) target = $region25
    $region24: #{tpu_custom_call.1} parent=1 // pred_region
      _
    $region25: #{tpu_custom_call.1} parent=1 // pred_fallthru
      _
    %v24 = vld [vmem:[%s0] sm:$0xff]
    %v25 = vld [vmem:[%s1] sm:$0xff]
    %v26 = vld [vmem:[%s1 + $0x8] sm:$0xff]
    %v27 = vld [vmem:[%s1 + $0x10] sm:$0xff]
    %v28 = vld [vmem:[%s1 + $0x18] sm:$0xff]
    %v29 = vld [vmem:[%s1 + $0x20] sm:$0xff]
    %v30 = vld [vmem:[%s1 + $0x28] sm:$0xff]
    %v31 = vld [vmem:[%s1 + $0x30] sm:$0xff]
    %v32 = vld [vmem:[%s1 + $0x38] sm:$0xff]
    %v33 = vld [vmem:[%s1 + $0x40] sm:$0xff]
    %v34 = vld [vmem:[%s1 + $0x48] sm:$0xff]
    %v35 = vld [vmem:[%s1 + $0x50] sm:$0xff]
    %v36 = vld [vmem:[%s1 + $0x58] sm:$0xff]
    %v37 = vld [vmem:[%s1 + $0x60] sm:$0xff]
    %v38 = vld [vmem:[%s1 + $0x68] sm:$0xff]
    %v39 = vld [vmem:[%s1 + $0x70] sm:$0xff]
    %v40 = vld [vmem:[%s1 + $0x78] sm:$0xff]
    %v41 = vld [vmem:[%s1 + $0x80] sm:$0xff]
    %v42 = vld [vmem:[%s1 + $0x88] sm:$0xff]
    %v43 = vld [vmem:[%s1 + $0x90] sm:$0xff]
    %v44 = vld [vmem:[%s1 + $0x98] sm:$0xff]
    %v45 = vld [vmem:[%s1 + $0xa0] sm:$0xff]
    %v46 = vld [vmem:[%s1 + $0xa8] sm:$0xff]
    %v47 = vld [vmem:[%s1 + $0xb0] sm:$0xff]
    %v48 = vld [vmem:[%s1 + $0xb8] sm:$0xff]
    %v49 = vld [vmem:[%s1 + $0xc0] sm:$0xff]
    %v50 = vld [vmem:[%s1 + $0xc8] sm:$0xff]
    %v51 = vld [vmem:[%s1 + $0xd0] sm:$0xff]
    %v52 = vld [vmem:[%s1 + $0xd8] sm:$0xff]
    %v53 = vld [vmem:[%s1 + $0xe0] sm:$0xff]
    %v54 = vld [vmem:[%s1 + $0xe8] sm:$0xff]
    %v55 = vld [vmem:[%s1 + $0xf0] sm:$0xff]
    %v56 = vld [vmem:[%s1 + $0xf8] sm:$0xff]
    %v57 = vld [vmem:[%s2] sm:$0xff]
    %v58 = vld [vmem:[%s2 + $0x8] sm:$0xff]
    %v59 = vld [vmem:[%s2 + $0x10] sm:$0xff]
    %v60 = vld [vmem:[%s2 + $0x18] sm:$0xff]
    %v61 = vld [vmem:[%s2 + $0x20] sm:$0xff]
    %v62 = vld [vmem:[%s2 + $0x28] sm:$0xff]
    %v63 = vld [vmem:[%s2 + $0x30] sm:$0xff]
    %v64 = vld [vmem:[%s2 + $0x38] sm:$0xff]
    %v65 = vld [vmem:[%s2 + $0x40] sm:$0xff]
    %v66 = vld [vmem:[%s2 + $0x48] sm:$0xff]
    %v67 = vld [vmem:[%s2 + $0x50] sm:$0xff]
    %v68 = vld [vmem:[%s2 + $0x58] sm:$0xff]
    %v69 = vld [vmem:[%s2 + $0x60] sm:$0xff]
    %v70 = vld [vmem:[%s2 + $0x68] sm:$0xff]
    %v71 = vld [vmem:[%s2 + $0x70] sm:$0xff]
    %v72 = vld [vmem:[%s2 + $0x78] sm:$0xff]
    %v73 = vld [vmem:[%s2 + $0x80] sm:$0xff]
    %v74 = vld [vmem:[%s2 + $0x88] sm:$0xff]
    %v75 = vld [vmem:[%s2 + $0x90] sm:$0xff]
    %v76 = vld [vmem:[%s2 + $0x98] sm:$0xff]
    %v77 = vld [vmem:[%s2 + $0xa0] sm:$0xff]
    %v78 = vld [vmem:[%s2 + $0xa8] sm:$0xff]
    %v79 = vld [vmem:[%s2 + $0xb0] sm:$0xff]
    %v80 = vld [vmem:[%s2 + $0xb8] sm:$0xff]
    %v81 = vld [vmem:[%s2 + $0xc0] sm:$0xff]
    %v82 = vld [vmem:[%s2 + $0xc8] sm:$0xff]
    %v83 = vld [vmem:[%s2 + $0xd0] sm:$0xff]
    %v84 = vld [vmem:[%s2 + $0xd8] sm:$0xff]
    %v85 = vld [vmem:[%s2 + $0xe0] sm:$0xff]
    %v86 = vld [vmem:[%s2 + $0xe8] sm:$0xff]
    %v87 = vld [vmem:[%s2 + $0xf0] sm:$0xff]
    %v88 = vld [vmem:[%s2 + $0xf8] sm:$0xff]
    %90 = vset.pattern.permute.xlu0 0
    %91 = vperm.xlu0 %90, %v57
    %v92 = vpop.permute.xlu0 %91
    %95 = vset.pattern.permute.xlu0 0
    %96 = vperm.xlu0 %95, %v58
    %v97 = vpop.permute.xlu0 %96
    %100 = vset.pattern.permute.xlu0 0
    %101 = vperm.xlu0 %100, %v59
    %v102 = vpop.permute.xlu0 %101
    %105 = vset.pattern.permute.xlu0 0
    %106 = vperm.xlu0 %105, %v60
    %v107 = vpop.permute.xlu0 %106
    %110 = vset.pattern.permute.xlu0 0
    %111 = vperm.xlu0 %110, %v61
    %v112 = vpop.permute.xlu0 %111
    %115 = vset.pattern.permute.xlu0 0
    %116 = vperm.xlu0 %115, %v62
    %v117 = vpop.permute.xlu0 %116
    %120 = vset.pattern.permute.xlu0 0
    %121 = vperm.xlu0 %120, %v63
    %v122 = vpop.permute.xlu0 %121
    %125 = vset.pattern.permute.xlu0 0
    %126 = vperm.xlu0 %125, %v64
    %v127 = vpop.permute.xlu0 %126
    %130 = vset.pattern.permute.xlu0 0
    %131 = vperm.xlu0 %130, %v65
    %v132 = vpop.permute.xlu0 %131
    %135 = vset.pattern.permute.xlu0 0
    %136 = vperm.xlu0 %135, %v66
    %v137 = vpop.permute.xlu0 %136
    %140 = vset.pattern.permute.xlu0 0
    %141 = vperm.xlu0 %140, %v67
    %v142 = vpop.permute.xlu0 %141
    %145 = vset.pattern.permute.xlu0 0
    %146 = vperm.xlu0 %145, %v68
    %v147 = vpop.permute.xlu0 %146
    %150 = vset.pattern.permute.xlu0 0
    %151 = vperm.xlu0 %150, %v69
    %v152 = vpop.permute.xlu0 %151
    %155 = vset.pattern.permute.xlu0 0
    %156 = vperm.xlu0 %155, %v70
    %v157 = vpop.permute.xlu0 %156
    %160 = vset.pattern.permute.xlu0 0
    %161 = vperm.xlu0 %160, %v71
    %v162 = vpop.permute.xlu0 %161
    %165 = vset.pattern.permute.xlu0 0
    %166 = vperm.xlu0 %165, %v72
    %v167 = vpop.permute.xlu0 %166
    %170 = vset.pattern.permute.xlu0 0
    %171 = vperm.xlu0 %170, %v73
    %v172 = vpop.permute.xlu0 %171
    %175 = vset.pattern.permute.xlu0 0
    %176 = vperm.xlu0 %175, %v74
    %v177 = vpop.permute.xlu0 %176
    %180 = vset.pattern.permute.xlu0 0
    %181 = vperm.xlu0 %180, %v75
    %v182 = vpop.permute.xlu0 %181
    %185 = vset.pattern.permute.xlu0 0
    %186 = vperm.xlu0 %185, %v76
    %v187 = vpop.permute.xlu0 %186
    %190 = vset.pattern.permute.xlu0 0
    %191 = vperm.xlu0 %190, %v77
    %v192 = vpop.permute.xlu0 %191
    %195 = vset.pattern.permute.xlu0 0
    %196 = vperm.xlu0 %195, %v78
    %v197 = vpop.permute.xlu0 %196
    %200 = vset.pattern.permute.xlu0 0
    %201 = vperm.xlu0 %200, %v79
    %v202 = vpop.permute.xlu0 %201
    %205 = vset.pattern.permute.xlu0 0
    %206 = vperm.xlu0 %205, %v80
    %v207 = vpop.permute.xlu0 %206
    %210 = vset.pattern.permute.xlu0 0
    %211 = vperm.xlu0 %210, %v81
    %v212 = vpop.permute.xlu0 %211
    %215 = vset.pattern.permute.xlu0 0
    %216 = vperm.xlu0 %215, %v82
    %v217 = vpop.permute.xlu0 %216
    %220 = vset.pattern.permute.xlu0 0
    %221 = vperm.xlu0 %220, %v83
    %v222 = vpop.permute.xlu0 %221
    %225 = vset.pattern.permute.xlu0 0
    %226 = vperm.xlu0 %225, %v84
    %v227 = vpop.permute.xlu0 %226
    %230 = vset.pattern.permute.xlu0 0
    %231 = vperm.xlu0 %230, %v85
    %v232 = vpop.permute.xlu0 %231
    %235 = vset.pattern.permute.xlu0 0
    %236 = vperm.xlu0 %235, %v86
    %v237 = vpop.permute.xlu0 %236
    %240 = vset.pattern.permute.xlu0 0
    %241 = vperm.xlu0 %240, %v87
    %v242 = vpop.permute.xlu0 %241
    %245 = vset.pattern.permute.xlu0 0
    %246 = vperm.xlu0 %245, %v88
    %v247 = vpop.permute.xlu0 %246
    %vm249 = vcmask 64512
    %v251 = vsel %vm249, %v25, 0
    %v254 = vsel %vm249, %v26, 0
    %v257 = vsel %vm249, %v27, 0
    %v260 = vsel %vm249, %v28, 0
    %v263 = vsel %vm249, %v29, 0
    %v266 = vsel %vm249, %v30, 0
    %v269 = vsel %vm249, %v31, 0
    %v272 = vsel %vm249, %v32, 0
    %v275 = vsel %vm249, %v33, 0
    %v278 = vsel %vm249, %v34, 0
    %v281 = vsel %vm249, %v35, 0
    %v284 = vsel %vm249, %v36, 0
    %v287 = vsel %vm249, %v37, 0
    %v290 = vsel %vm249, %v38, 0
    %v293 = vsel %vm249, %v39, 0
    %v296 = vsel %vm249, %v40, 0
    %v299 = vsel %vm249, %v41, 0
    %v302 = vsel %vm249, %v42, 0
    %v305 = vsel %vm249, %v43, 0
    %v308 = vsel %vm249, %v44, 0
    %v311 = vsel %vm249, %v45, 0
    %v314 = vsel %vm249, %v46, 0
    %v317 = vsel %vm249, %v47, 0
    %v320 = vsel %vm249, %v48, 0
    %v323 = vsel %vm249, %v49, 0
    %v326 = vsel %vm249, %v50, 0
    %v329 = vsel %vm249, %v51, 0
    %v332 = vsel %vm249, %v52, 0
    %v335 = vsel %vm249, %v53, 0
    %v338 = vsel %vm249, %v54, 0
    %v341 = vsel %vm249, %v55, 0
    %v344 = vsel %vm249, %v56, 0
    %346 = vmatprep.subr.mxu0 0.0
    %347 = vmatpush1.msra.mxu0 %v24
    %348 = vmatprep.subr.mxu0 0.0
    %349 = vmatpush1.msra.mxu0 0.0
    %350 = vmatprep.subr.mxu0 0.0
    %351 = vmatpush1.msra.mxu0 0.0
    %352 = vmatprep.subr.mxu0 0.0
    %353 = vmatpush1.msra.mxu0 0.0
    %354 = vmatprep.subr.mxu0 0.0
    %355 = vmatpush1.msra.mxu0 0.0
    %356 = vmatprep.subr.mxu0 0.0
    %357 = vmatpush1.msra.mxu0 0.0
    %358 = vmatprep.subr.mxu0 0.0
    %359 = vmatpush1.msra.mxu0 0.0
    %360 = vmatprep.subr.mxu0 0.0
    %361 = vmatpush1.msra.mxu0 0.0
    %362 = vmatprep.subr.mxu0 0.0
    %363 = vmatpush1.msra.mxu0 0.0
    %364 = vmatprep.subr.mxu0 0.0
    %365 = vmatpush1.msra.mxu0 0.0
    %366 = vmatprep.subr.mxu0 0.0
    %367 = vmatpush1.msra.mxu0 0.0
    %368 = vmatprep.subr.mxu0 0.0
    %369 = vmatpush1.msra.mxu0 0.0
    %370 = vmatprep.subr.mxu0 0.0
    %371 = vmatpush1.msra.mxu0 0.0
    %372 = vmatprep.subr.mxu0 0.0
    %373 = vmatpush1.msra.mxu0 0.0
    %374 = vmatprep.subr.mxu0 0.0
    %375 = vmatpush1.msra.mxu0 0.0
    %376 = vmatprep.subr.mxu0 0.0
    %377 = vmatpush1.msra.mxu0 0.0
    %378 = vmatprep.subr.mxu0 0.0
    %379 = vmatpush1.msra.mxu0 0.0
    %380 = vmatprep.subr.mxu0 0.0
    %381 = vmatpush1.msra.mxu0 0.0
    %382 = vmatprep.subr.mxu0 0.0
    %383 = vmatpush1.msra.mxu0 0.0
    %384 = vmatprep.subr.mxu0 0.0
    %385 = vmatpush1.msra.mxu0 0.0
    %386 = vmatprep.subr.mxu0 0.0
    %387 = vmatpush1.msra.mxu0 0.0
    %388 = vmatprep.subr.mxu0 0.0
    %389 = vmatpush1.msra.mxu0 0.0
    %390 = vmatprep.subr.mxu0 0.0
    %391 = vmatpush1.msra.mxu0 0.0
    %392 = vmatprep.subr.mxu0 0.0
    %393 = vmatpush1.msra.mxu0 0.0
    %394 = vmatprep.subr.mxu0 0.0
    %395 = vmatpush1.msra.mxu0 0.0
    %396 = vmatprep.subr.mxu0 0.0
    %397 = vmatpush1.msra.mxu0 0.0
    %398 = vmatprep.subr.mxu0 0.0
    %399 = vmatpush1.msra.mxu0 0.0
    %400 = vmatprep.subr.mxu0 0.0
    %401 = vmatpush1.msra.mxu0 0.0
    %402 = vmatprep.subr.mxu0 0.0
    %403 = vmatpush1.msra.mxu0 0.0
    %404 = vmatprep.subr.mxu0 0.0
    %405 = vmatpush1.msra.mxu0 0.0
    %406 = vmatprep.subr.mxu0 0.0
    %407 = vmatpush1.msra.mxu0 0.0
    %408 = vmatprep.subr.mxu0 0.0
    %409 = vmatpush1.msra.mxu0 0.0
    %410 = vmatprep.mubr.f32.mxu0 0.0
    %411 = vmatmul.mubr.f32.gmra.mrb[0].mxu0 %v251
    %v412 = vpop.f32.mrb[0].mxu0
    %v413 = vadd.f32 %v92, %v412
    %v414 = vpop.f32.mrb[0].mxu0
    %415 = vmatprep.mubr.f32.mxu0 0.0
    %416 = vmatmul.mubr.f32.gmra.mrb[0].mxu0 %v254
    %v417 = vpop.f32.mrb[0].mxu0
    %v418 = vadd.f32 %v97, %v417
    %v419 = vpop.f32.mrb[0].mxu0
    %420 = vmatprep.mubr.f32.mxu0 0.0
    %421 = vmatmul.mubr.f32.gmra.mrb[0].mxu0 %v257
    %v422 = vpop.f32.mrb[0].mxu0
    %v423 = vadd.f32 %v102, %v422
    %v424 = vpop.f32.mrb[0].mxu0
    %425 = vmatprep.mubr.f32.mxu0 0.0
    %426 = vmatmul.mubr.f32.gmra.mrb[0].mxu0 %v260
    %v427 = vpop.f32.mrb[0].mxu0
    %v428 = vadd.f32 %v107, %v427
    %v429 = vpop.f32.mrb[0].mxu0
    %430 = vmatprep.mubr.f32.mxu0 0.0
    %431 = vmatmul.mubr.f32.gmra.mrb[0].mxu0 %v263
    %v432 = vpop.f32.mrb[0].mxu0
    %v433 = vadd.f32 %v112, %v432
    %v434 = vpop.f32.mrb[0].mxu0
    %435 = vmatprep.mubr.f32.mxu0 0.0
    %436 = vmatmul.mubr.f32.gmra.mrb[0].mxu0 %v266
    %v437 = vpop.f32.mrb[0].mxu0
    %v438 = vadd.f32 %v117, %v437
    %v439 = vpop.f32.mrb[0].mxu0
    %440 = vmatprep.mubr.f32.mxu0 0.0
    %441 = vmatmul.mubr.f32.gmra.mrb[0].mxu0 %v269
    %v442 = vpop.f32.mrb[0].mxu0
    %v443 = vadd.f32 %v122, %v442
    %v444 = vpop.f32.mrb[0].mxu0
    %445 = vmatprep.mubr.f32.mxu0 0.0
    %446 = vmatmul.mubr.f32.gmra.mrb[0].mxu0 %v272
    %v447 = vpop.f32.mrb[0].mxu0
    %v448 = vadd.f32 %v127, %v447
    %v449 = vpop.f32.mrb[0].mxu0
    %450 = vmatprep.mubr.f32.mxu0 0.0
    %451 = vmatmul.mubr.f32.gmra.mrb[0].mxu0 %v275
    %v452 = vpop.f32.mrb[0].mxu0
    %v453 = vadd.f32 %v132, %v452
    %v454 = vpop.f32.mrb[0].mxu0
    %455 = vmatprep.mubr.f32.mxu0 0.0
    %456 = vmatmul.mubr.f32.gmra.mrb[0].mxu0 %v278
    %v457 = vpop.f32.mrb[0].mxu0
    %v458 = vadd.f32 %v137, %v457
    %v459 = vpop.f32.mrb[0].mxu0
    %460 = vmatprep.mubr.f32.mxu0 0.0
    %461 = vmatmul.mubr.f32.gmra.mrb[0].mxu0 %v281
    %v462 = vpop.f32.mrb[0].mxu0
    %v463 = vadd.f32 %v142, %v462
    %v464 = vpop.f32.mrb[0].mxu0
    %465 = vmatprep.mubr.f32.mxu0 0.0
    %466 = vmatmul.mubr.f32.gmra.mrb[0].mxu0 %v284
    %v467 = vpop.f32.mrb[0].mxu0
    %v468 = vadd.f32 %v147, %v467
    %v469 = vpop.f32.mrb[0].mxu0
    %470 = vmatprep.mubr.f32.mxu0 0.0
    %471 = vmatmul.mubr.f32.gmra.mrb[0].mxu0 %v287
    %v472 = vpop.f32.mrb[0].mxu0
    %v473 = vadd.f32 %v152, %v472
    %v474 = vpop.f32.mrb[0].mxu0
    %475 = vmatprep.mubr.f32.mxu0 0.0
    %476 = vmatmul.mubr.f32.gmra.mrb[0].mxu0 %v290
    %v477 = vpop.f32.mrb[0].mxu0
    %v478 = vadd.f32 %v157, %v477
    %v479 = vpop.f32.mrb[0].mxu0
    %480 = vmatprep.mubr.f32.mxu0 0.0
    %481 = vmatmul.mubr.f32.gmra.mrb[0].mxu0 %v293
    %v482 = vpop.f32.mrb[0].mxu0
    %v483 = vadd.f32 %v162, %v482
    %v484 = vpop.f32.mrb[0].mxu0
    %485 = vmatprep.mubr.f32.mxu0 0.0
    %486 = vmatmul.mubr.f32.gmra.mrb[0].mxu0 %v296
    %v487 = vpop.f32.mrb[0].mxu0
    %v488 = vadd.f32 %v167, %v487
    %v489 = vpop.f32.mrb[0].mxu0
    %490 = vmatprep.mubr.f32.mxu0 0.0
    %491 = vmatmul.mubr.f32.gmra.mrb[0].mxu0 %v299
    %v492 = vpop.f32.mrb[0].mxu0
    %v493 = vadd.f32 %v172, %v492
    %v494 = vpop.f32.mrb[0].mxu0
    %495 = vmatprep.mubr.f32.mxu0 0.0
    %496 = vmatmul.mubr.f32.gmra.mrb[0].mxu0 %v302
    %v497 = vpop.f32.mrb[0].mxu0
    %v498 = vadd.f32 %v177, %v497
    %v499 = vpop.f32.mrb[0].mxu0
    %500 = vmatprep.mubr.f32.mxu0 0.0
    %501 = vmatmul.mubr.f32.gmra.mrb[0].mxu0 %v305
    %v502 = vpop.f32.mrb[0].mxu0
    %v503 = vadd.f32 %v182, %v502
    %v504 = vpop.f32.mrb[0].mxu0
    %505 = vmatprep.mubr.f32.mxu0 0.0
    %506 = vmatmul.mubr.f32.gmra.mrb[0].mxu0 %v308
    %v507 = vpop.f32.mrb[0].mxu0
    %v508 = vadd.f32 %v187, %v507
    %v509 = vpop.f32.mrb[0].mxu0
    %510 = vmatprep.mubr.f32.mxu0 0.0
    %511 = vmatmul.mubr.f32.gmra.mrb[0].mxu0 %v311
    %v512 = vpop.f32.mrb[0].mxu0
    %v513 = vadd.f32 %v192, %v512
    %v514 = vpop.f32.mrb[0].mxu0
    %515 = vmatprep.mubr.f32.mxu0 0.0
    %516 = vmatmul.mubr.f32.gmra.mrb[0].mxu0 %v314
    %v517 = vpop.f32.mrb[0].mxu0
    %v518 = vadd.f32 %v197, %v517
    %v519 = vpop.f32.mrb[0].mxu0
    %520 = vmatprep.mubr.f32.mxu0 0.0
    %521 = vmatmul.mubr.f32.gmra.mrb[0].mxu0 %v317
    %v522 = vpop.f32.mrb[0].mxu0
    %v523 = vadd.f32 %v202, %v522
    %v524 = vpop.f32.mrb[0].mxu0
    %525 = vmatprep.mubr.f32.mxu0 0.0
    %526 = vmatmul.mubr.f32.gmra.mrb[0].mxu0 %v320
    %v527 = vpop.f32.mrb[0].mxu0
    %v528 = vadd.f32 %v207, %v527
    %v529 = vpop.f32.mrb[0].mxu0
    %530 = vmatprep.mubr.f32.mxu0 0.0
    %531 = vmatmul.mubr.f32.gmra.mrb[0].mxu0 %v323
    %v532 = vpop.f32.mrb[0].mxu0
    %v533 = vadd.f32 %v212, %v532
    %v534 = vpop.f32.mrb[0].mxu0
    %535 = vmatprep.mubr.f32.mxu0 0.0
    %536 = vmatmul.mubr.f32.gmra.mrb[0].mxu0 %v326
    %v537 = vpop.f32.mrb[0].mxu0
    %v538 = vadd.f32 %v217, %v537
    %v539 = vpop.f32.mrb[0].mxu0
    %540 = vmatprep.mubr.f32.mxu0 0.0
    %541 = vmatmul.mubr.f32.gmra.mrb[0].mxu0 %v329
    %v542 = vpop.f32.mrb[0].mxu0
    %v543 = vadd.f32 %v222, %v542
    %v544 = vpop.f32.mrb[0].mxu0
    %545 = vmatprep.mubr.f32.mxu0 0.0
    %546 = vmatmul.mubr.f32.gmra.mrb[0].mxu0 %v332
    %v547 = vpop.f32.mrb[0].mxu0
    %v548 = vadd.f32 %v227, %v547
    %v549 = vpop.f32.mrb[0].mxu0
    %550 = vmatprep.mubr.f32.mxu0 0.0
    %551 = vmatmul.mubr.f32.gmra.mrb[0].mxu0 %v335
    %v552 = vpop.f32.mrb[0].mxu0
    %v553 = vadd.f32 %v232, %v552
    %v554 = vpop.f32.mrb[0].mxu0
    %555 = vmatprep.mubr.f32.mxu0 0.0
    %556 = vmatmul.mubr.f32.gmra.mrb[0].mxu0 %v338
    %v557 = vpop.f32.mrb[0].mxu0
    %v558 = vadd.f32 %v237, %v557
    %v559 = vpop.f32.mrb[0].mxu0
    %560 = vmatprep.mubr.f32.mxu0 0.0
    %561 = vmatmul.mubr.f32.gmra.mrb[0].mxu0 %v341
    %v562 = vpop.f32.mrb[0].mxu0
    %v563 = vadd.f32 %v242, %v562
    %v564 = vpop.f32.mrb[0].mxu0
    %565 = vmatprep.mubr.f32.mxu0 0.0
    %566 = vmatmul.mubr.f32.gmra.mrb[0].mxu0 %v344
    %v567 = vpop.f32.mrb[0].mxu0
    %v568 = vadd.f32 %v247, %v567
    %v569 = vpop.f32.mrb[0].mxu0
    %570 = vdwg.mxu0
    %v571 = vmax.f32 %v413, 0.0
    %v572 = vmax.f32 %v418, 0.0
    %v573 = vmax.f32 %v423, 0.0
    %v574 = vmax.f32 %v428, 0.0
    %v575 = vmax.f32 %v433, 0.0
    %v576 = vmax.f32 %v438, 0.0
    %v577 = vmax.f32 %v443, 0.0
    %v578 = vmax.f32 %v448, 0.0
    %v579 = vmax.f32 %v453, 0.0
    %v580 = vmax.f32 %v458, 0.0
    %v581 = vmax.f32 %v463, 0.0
    %v582 = vmax.f32 %v468, 0.0
    %v583 = vmax.f32 %v473, 0.0
    %v584 = vmax.f32 %v478, 0.0
    %v585 = vmax.f32 %v483, 0.0
    %v586 = vmax.f32 %v488, 0.0
    %v587 = vmax.f32 %v493, 0.0
    %v588 = vmax.f32 %v498, 0.0
    %v589 = vmax.f32 %v503, 0.0
    %v590 = vmax.f32 %v508, 0.0
    %v591 = vmax.f32 %v513, 0.0
    %v592 = vmax.f32 %v518, 0.0
    %v593 = vmax.f32 %v523, 0.0
    %v594 = vmax.f32 %v528, 0.0
    %v595 = vmax.f32 %v533, 0.0
    %v596 = vmax.f32 %v538, 0.0
    %v597 = vmax.f32 %v543, 0.0
    %v598 = vmax.f32 %v548, 0.0
    %v599 = vmax.f32 %v553, 0.0
    %v600 = vmax.f32 %v558, 0.0
    %v601 = vmax.f32 %v563, 0.0
    %v602 = vmax.f32 %v568, 0.0
    %v603 = vld [vmem:[%s3] sm:$0xf]
    %v604 = vld [vmem:[%s4] sm:$0x3]
    %606 = vset.pattern.permute.xlu0 0
    %607 = vperm.xlu0 %606, %v604
    %v608 = vpop.permute.xlu0 %607
    %v612 = vunpack.c.l.s4 1983009808
    %v613 = vunpack.c.0.s8 %v612
    %v614 = vlaneseq
    %v615 = vshrl.u32 %v614, 7
    %v616 = vsub.s32 %v613, %v615
    %v617 = vrot.slane %v603, %v616
    %v618 = vcombine.high %v617, %v617
    %621 = vmatprep.subr.mxu0 0.0
    %622 = vmatpush1.msra.mxu0 %v571
    %623 = vmatprep.subr.mxu0 0.0
    %624 = vmatpush1.msra.mxu0 %v572
    %625 = vmatprep.subr.mxu0 0.0
    %626 = vmatpush1.msra.mxu0 %v573
    %627 = vmatprep.subr.mxu0 0.0
    %628 = vmatpush1.msra.mxu0 %v574
    %629 = vmatprep.subr.mxu0 0.0
    %630 = vmatpush1.msra.mxu0 %v575
    %631 = vmatprep.subr.mxu0 0.0
    %632 = vmatpush1.msra.mxu0 %v576
    %633 = vmatprep.subr.mxu0 0.0
    %634 = vmatpush1.msra.mxu0 %v577
    %635 = vmatprep.subr.mxu0 0.0
    %636 = vmatpush1.msra.mxu0 %v578
    %637 = vmatprep.subr.mxu0 0.0
    %638 = vmatpush1.msra.mxu0 %v579
    %639 = vmatprep.subr.mxu0 0.0
    %640 = vmatpush1.msra.mxu0 %v580
    %641 = vmatprep.subr.mxu0 0.0
    %642 = vmatpush1.msra.mxu0 %v581
    %643 = vmatprep.subr.mxu0 0.0
    %644 = vmatpush1.msra.mxu0 %v582
    %645 = vmatprep.subr.mxu0 0.0
    %646 = vmatpush1.msra.mxu0 %v583
    %647 = vmatprep.subr.mxu0 0.0
    %648 = vmatpush1.msra.mxu0 %v584
    %649 = vmatprep.subr.mxu0 0.0
    %650 = vmatpush1.msra.mxu0 %v585
    %651 = vmatprep.subr.mxu0 0.0
    %652 = vmatpush1.msra.mxu0 %v586
    %653 = vmatprep.subr.mxu0 0.0
    %654 = vmatpush1.msra.mxu0 %v587
    %655 = vmatprep.subr.mxu0 0.0
    %656 = vmatpush1.msra.mxu0 %v588
    %657 = vmatprep.subr.mxu0 0.0
    %658 = vmatpush1.msra.mxu0 %v589
    %659 = vmatprep.subr.mxu0 0.0
    %660 = vmatpush1.msra.mxu0 %v590
    %661 = vmatprep.subr.mxu0 0.0
    %662 = vmatpush1.msra.mxu0 %v591
    %663 = vmatprep.subr.mxu0 0.0
    %664 = vmatpush1.msra.mxu0 %v592
    %665 = vmatprep.subr.mxu0 0.0
    %666 = vmatpush1.msra.mxu0 %v593
    %667 = vmatprep.subr.mxu0 0.0
    %668 = vmatpush1.msra.mxu0 %v594
    %669 = vmatprep.subr.mxu0 0.0
    %670 = vmatpush1.msra.mxu0 %v595
    %671 = vmatprep.subr.mxu0 0.0
    %672 = vmatpush1.msra.mxu0 %v596
    %673 = vmatprep.subr.mxu0 0.0
    %674 = vmatpush1.msra.mxu0 %v597
    %675 = vmatprep.subr.mxu0 0.0
    %676 = vmatpush1.msra.mxu0 %v598
    %677 = vmatprep.subr.mxu0 0.0
    %678 = vmatpush1.msra.mxu0 %v599
    %679 = vmatprep.subr.mxu0 0.0
    %680 = vmatpush1.msra.mxu0 %v600
    %681 = vmatprep.subr.mxu0 0.0
    %682 = vmatpush1.msra.mxu0 %v601
    %683 = vmatprep.subr.mxu0 0.0
    %684 = vmatpush1.msra.mxu0 %v602
    %685 = vmatprep.mubr.f32.mxu0 %v618
    %686 = vmatmul.mubr.f32.gmra.mrb[0].mxu0 %v617
    %v687 = vpop.f32.mrb[0].mxu0
    %v688 = vadd.f32 %v608, %v687
    %v689 = vpop.f32.mrb[0].mxu0
    %690 = vdwg.mxu0
    %v691 = vmax.f32 %v688, 0.0
    %v692 = vand.u32 2147483647, %v688
    %v693 = vsub.f32 0.0, %v692
    %v694 = vmul.f32 %v693, 1.442695
    %v695 = vpow.pop %v694
    %v696 = vadd.f32 %v695, 1.0
    %v697 = vlog2.pop %v696
    %v698 = vmul.f32 %v697, 0.6931472
    %v699 = vmul.f32 -0.5, %v695
    %v700 = vadd.f32 %v699, 1.0
    %v701 = vmul.f32 %v700, %v695
    %v702 = vand.u32 2147483647, %v695
    %vm703 = vcmp.lt.f32.partialorder %v702, 0.0004427343
    %v704 = vsel %vm703, %v701, %v698
    %v705 = vadd.f32 %v691, %v704
    %v706 = vld [vmem:[%s5] sm:$0x1]
    %v708 = vlaneseq
    %v709 = vshrl.u32 %v708, 7
    %v710 = vsub.s32 0, %v709
    %v711 = vrot.slane %v706, %v710
    %v713 = vmul.f32 %v705, %v711
    %v715 = vrot.slane %v713, 1
    %v717 = vadd.f32 %v688, %v715
    %v718 = vmul.f32 %v706, -0.5
    %v719 = vmul.f32 %v718, %v706
    %v720 = vlog2.pop %v705
    %v721 = vmul.f32 %v720, 0.6931472
    %v724 = vunpack.c.l.s4 1966171168
    %v725 = vunpack.c.0.s8 %v724
    %v726 = vlaneseq
    %v727 = vshrl.u32 %v726, 7
    %v728 = vsub.s32 %v725, %v727
    %v729 = vrot.slane %v721, %v728
    %v730 = vcombine.high %v729, %v729
    %v732 = vunpack.c.l.s4 1966171168
    %v733 = vunpack.c.0.s8 %v732
    %v734 = vlaneseq
    %v735 = vshrl.u32 %v734, 7
    %v736 = vsub.s32 %v733, %v735
    %v737 = vrot.slane %v730, %v736
    %v739 = vsub.f32 %v719, %v737
    %v740 = vsub.f32 %v739, 0.9189385
    %v741 = vtanh.pop %v717
    %742 = vst [vmem:[#allocation2] sm:$0x1] %v741
    %v743 = vmul.f32 %v741, %v741
    %v744 = vsub.f32 1.0, %v743
    %v745 = vadd.f32 %v744, 1e-07
    %v746 = vlog2.pop %v745
    %v747 = vmul.f32 %v746, 0.6931472
    %v748 = vsub.f32 %v740, %v747
    %749 = vst [vmem:[#allocation2 + $0x1] sm:$0x1] %v748
    // Predicated region
    $region26: #{tpu_custom_call.1} parent=1 // pred_check
      _
    $region27: #{tpu_custom_call.1} parent=1 // pred_check_branch
      %751 = sbr.rel (0) target = $region29
    $region28: #{tpu_custom_call.1} parent=1 // pred_region
      %s753 = ssub.s32 32, 32
      %754 = vsyncadd [#allocation3], %s753
      %s756 = sshll.u32 [#allocation2], 4
      %s757 = int_to_ptr.vmem [resolvable:$true] %s756
      %759 = dma.vmem_to_hbm [thread:$0]  %s757, 32, %s6, [#allocation3]
    $region29: #{tpu_custom_call.1} parent=1 // pred_fallthru
      _
    // Predicated region
    $region30: #{tpu_custom_call.1} parent=1 // pred_check
      _
    $region31: #{tpu_custom_call.1} parent=1 // pred_check_branch
      %761 = sbr.rel (0) target = $region33
    $region32: #{tpu_custom_call.1} parent=1 // pred_region
      %762 = dma.done [#allocation3], 32
    $region33: #{tpu_custom_call.1} parent=1 // pred_fallthru
      _
    %763 = vsyncpa [#allocation3], 1

</llo_original>
